<compile_context>
chip_gen: v5e
topology: v5e:2x2
jax: 0.10.0
libtpu: 0.0.40
codegen_flags: <defaults>
</compile_context>

<pallas_src>
from typing import NamedTuple

import jax
import jax.numpy as jnp
from jax import lax
from jax.experimental import pallas as pl
from jax.experimental.pallas import tpu as pltpu


class BackboneOutput(NamedTuple):
    encodings: jax.Array


def _build_row_selector(*, KH, scale, padding, H, dtype):
    """S[kh, oh, i] = 1 iff padded/upsampled row (oh + kh - padding) maps to source row i."""
    Hu = H * scale
    Ho = Hu + 2 * padding - KH + 1
    r = (jnp.arange(Ho)[None, :, None]
         + jnp.arange(KH)[:, None, None]
         - padding)                                          # (KH, Ho, 1)
    valid = (r >= 0) & (r < Hu)
    src = jnp.where(valid, r // scale, -1)                   # -1 never matches arange(H)
    sel = src == jnp.arange(H)[None, None, :]                # (KH, Ho, H)
    return sel.astype(dtype)


def _build_col_weights(w_hwio, *, scale, padding, W, dtype):
    """B[kh, wi*Cin+ci, ow*Cout+co] = sum over taps kw whose padded/upsampled column
    (ow + kw - padding) maps to source column wi of w[kh, kw, ci, co]."""
    KH, KW, Cin, Cout = w_hwio.shape
    Wu = W * scale
    Wo = Wu + 2 * padding - KW + 1
    q = jnp.arange(Wo)[:, None] + jnp.arange(KW)[None, :] - padding   # (Wo, KW)
    valid = (q >= 0) & (q < Wu)
    src = jnp.where(valid, q // scale, -1)
    onehot = (src[:, :, None] == jnp.arange(W)[None, None, :]).astype(jnp.float32)  # (Wo, KW, W)
    # (q=ow, k=kw, s=src col) x (h=kh, k=kw, i=cin, o=cout) -> (kh, s, cin, ow, cout)
    b5 = jnp.einsum("qks,hkio->hsiqo", onehot, w_hwio.astype(jnp.float32))
    return b5.reshape(KH, W * Cin, Wo * Cout).astype(dtype)


def _make_kernel(KH):
    def kernel(x_ref, s_ref, b_ref, o_ref):
        # x_ref: (NB*H, W*Cin)            original images of this tile, rows = n*H + h
        # s_ref: (KH, NB*Ho, NB*H)        block-diag row selector (upsample+pad+kh tap)
        # b_ref: (KH, W*Cin, Wo*Cout)     tap/weight matrix (W upsample + pad + conv)
        # o_ref: (NB*Ho, Wo*Cout)         lane-dense output block, rows = n*Ho + oh
        x = x_ref[...]
        acc = jnp.zeros(o_ref.shape, dtype=jnp.float32)
        for kh in range(KH):
            rows = jnp.dot(s_ref[kh], x, preferred_element_type=jnp.float32)
            rows = rows.astype(x.dtype)   # exact: entries are copies of x (or 0)
            acc = acc + jnp.dot(rows, b_ref[kh], preferred_element_type=jnp.float32)
        o_ref[...] = acc.astype(o_ref.dtype)
    return kernel


def resize_conv2d(x_nchw, weight_oihw, *, scale_factor, padding,
                  compute_dtype=jnp.bfloat16, batch_tile=8):
    """Forward pass of ResizeConv2d (mode='nearest', groups=1, bias=False).

    x_nchw:      (N, Cin, H, W)
    weight_oihw: (Cout, Cin, KH, KW)  -- nn.Conv2d weight layout
    Returns BackboneOutput(encodings=(N, Cout, H*scale, W*scale)).
    """
    N, Cin, H, W = x_nchw.shape
    Cout, Cin_w, KH, KW = weight_oihw.shape
    assert Cin == Cin_w, "groups=1 only"
    # TODO(synk): groups > 1, bias=True and interpolation modes other than 'nearest'
    # are not implemented (module defaults are used).

    Hu, Wu = H * scale_factor, W * scale_factor
    Ho = Hu + 2 * padding - KH + 1
    Wo = Wu + 2 * padding - KW + 1

    # Batch tiling: NB images per grid step; pad batch to a multiple of NB.
    NB = max(1, min(N, batch_tile))
    num_tiles = -(-N // NB)
    N_pad = num_tiles * NB

    w_hwio = jnp.transpose(weight_oihw, (2, 3, 1, 0))                 # (KH, KW, Cin, Cout)
    s_mat = _build_row_selector(KH=KH, scale=scale_factor, padding=padding,
                                H=H, dtype=compute_dtype)             # (KH, Ho, H)
    # Block-diagonal expansion over the batch tile:  S_blk = I_NB (x) S.
    eye = jnp.eye(NB, dtype=s_mat.dtype)
    s_blk = jnp.einsum("nm,koh->knomh", eye, s_mat).reshape(KH, NB * Ho, NB * H)
    b_mat = _build_col_weights(w_hwio, scale=scale_factor, padding=padding,
                               W=W, dtype=compute_dtype)              # (KH, W*Cin, Wo*Cout)

    # Original (un-upsampled, un-padded) activations, NHWC flattened on (W, Cin),
    # then batch flattened onto the sublane axis: row index = n*H + h.
    x_flat = (jnp.transpose(x_nchw, (0, 2, 3, 1))
              .reshape(N, H, W * Cin)
              .astype(compute_dtype))
    if N_pad != N:
        x_flat = jnp.pad(x_flat, ((0, N_pad - N), (0, 0), (0, 0)))
    x2d = x_flat.reshape(N_pad * H, W * Cin)

    kernel = _make_kernel(KH)
    out2 = pl.pallas_call(
        kernel,
        out_shape=jax.ShapeDtypeStruct((N_pad * Ho, Wo * Cout), x_nchw.dtype),
        grid_spec=pltpu.PrefetchScalarGridSpec(
            num_scalar_prefetch=0,
            grid=(num_tiles,),
            in_specs=[
                pl.BlockSpec((NB * H, W * Cin), lambda t: (t, 0)),
                # Constant index maps: these blocks are fetched once and reused
                # across grid steps by the pipeline.
                pl.BlockSpec((KH, NB * Ho, NB * H), lambda t: (0, 0, 0)),
                pl.BlockSpec((KH, W * Cin, Wo * Cout), lambda t: (0, 0, 0)),
            ],
            out_specs=pl.BlockSpec((NB * Ho, Wo * Cout), lambda t: (t, 0)),
        ),
        compiler_params=pltpu.CompilerParams(
            dimension_semantics=("parallel",),
        ),
    )(x2d, s_blk, b_mat)

    out_nhwc = out2.reshape(N_pad, Ho, Wo, Cout)[:N]
    out_nchw = jnp.transpose(out_nhwc, (0, 3, 1, 2))
    return BackboneOutput(encodings=out_nchw)


def _reference(x_nchw, weight_oihw, *, scale_factor, padding):
    """Pure-JAX reference matching F.interpolate(nearest) + F.conv2d."""
    x_up = jnp.repeat(jnp.repeat(x_nchw, scale_factor, axis=2), scale_factor, axis=3)
    return lax.conv_general_dilated(
        x_up, weight_oihw,
        window_strides=(1, 1),
        padding=((padding, padding), (padding, padding)),
        dimension_numbers=("NCHW", "OIHW", "NCHW"),
        precision=lax.Precision.HIGHEST)


if __name__ == "__main__":
    # Module config: ResizeConv2d(in_channels=4, out_channels=8, kernel_size=3,
    #                             scale_factor=2, mode='nearest', bias=False, padding=1)
    in_channels, out_channels, kernel_size = 4, 8, 3
    scale_factor, padding = 2, 1
    N, H, W = 2, 16, 16

    key = jax.random.PRNGKey(0)
    kx, kw = jax.random.split(key)
    x = jax.random.normal(kx, (N, in_channels, H, W), dtype=jnp.float32)
    fan_in = in_channels * kernel_size * kernel_size
    weight = jax.random.normal(
        kw, (out_channels, in_channels, kernel_size, kernel_size), dtype=jnp.float32
    ) * (1.0 / jnp.sqrt(fan_in))

    ref = jax.block_until_ready(
        _reference(x, weight, scale_factor=scale_factor, padding=padding))

    # 1) f32 path: validates the fused upsample/pad/conv formulation exactly.
    out_f32 = resize_conv2d(x, weight, scale_factor=scale_factor, padding=padding,
                            compute_dtype=jnp.float32)
    enc_f32 = jax.block_until_ready(out_f32.encodings)
    assert enc_f32.shape == (N, out_channels, H * scale_factor, W * scale_factor), enc_f32.shape
    assert jnp.allclose(enc_f32, ref, atol=5e-4, rtol=5e-4), "f32 path mismatch vs reference"

    # 2) fast path: bf16 activations/weights on the MXU with f32 accumulation.
    out_bf16 = resize_conv2d(x, weight, scale_factor=scale_factor, padding=padding,
                             compute_dtype=jnp.bfloat16)
    enc_bf16 = jax.block_until_ready(out_bf16.encodings)
    assert enc_bf16.shape == ref.shape
    assert jnp.allclose(enc_bf16, ref, atol=5e-2, rtol=5e-2), "bf16 path mismatch vs reference"

    print("KERNEL_OK")
</pallas_src>

<mosaic_0001>
module attributes {stable_mosaic.version = 11 : i64} {
  func.func @kernel(%arg0: i32, %arg1: memref<32x64xf32, #tpu.memory_space<vmem>>, %arg2: memref<3x64x32xf32, #tpu.memory_space<vmem>>, %arg3: memref<3x64x256xf32, #tpu.memory_space<vmem>>, %arg4: memref<64x256xf32, #tpu.memory_space<vmem>>) attributes {dimension_semantics = [#tpu.dimension_semantics<parallel>], iteration_bounds = array<i64: 1>, scalar_prefetch = 0 : i64, scratch_operands = 0 : i64, tpu.core_type = #tpu.core_type<tc>, window_params = [{transform_indices = @transform_0, window_bounds = array<i64: 32, 64>}, {pipeline_mode = #tpu.pipeline_mode<synchronous>, transform_indices = @transform_1, window_bounds = array<i64: 3, 64, 32>}, {pipeline_mode = #tpu.pipeline_mode<synchronous>, transform_indices = @transform_2, window_bounds = array<i64: 3, 64, 256>}, {transform_indices = @transform_3, window_bounds = array<i64: 64, 256>}]} {
    %c0 = arith.constant 0 : index
    %c0_0 = arith.constant 0 : index
    %0 = vector.load %arg1[%c0, %c0_0] : memref<32x64xf32, #tpu.memory_space<vmem>>, vector<32x64xf32>
    %cst = arith.constant 0.000000e+00 : f32
    %1 = vector.broadcast %cst : f32 to vector<64x256xf32>
    %c0_1 = arith.constant 0 : index
    %c0_2 = arith.constant 0 : index
    %c0_3 = arith.constant 0 : index
    %2 = vector.load %arg2[%c0_1, %c0_2, %c0_3] : memref<3x64x32xf32, #tpu.memory_space<vmem>>, vector<1x64x32xf32>
    %3 = vector.shape_cast %2 : vector<1x64x32xf32> to vector<64x32xf32>
    %cst_4 = arith.constant dense<0.000000e+00> : vector<64x64xf32>
    %4 = tpu.matmul %3, %0, %cst_4 {dimension_numbers = #tpu.dot_dimension_numbers<[1], [0], [0], [1], [0, 0, 1, 1], [], []>} : vector<64x32xf32>, vector<32x64xf32>, vector<64x64xf32> -> vector<64x64xf32>
    %c0_5 = arith.constant 0 : index
    %c0_6 = arith.constant 0 : index
    %c0_7 = arith.constant 0 : index
    %5 = vector.load %arg3[%c0_5, %c0_6, %c0_7] : memref<3x64x256xf32, #tpu.memory_space<vmem>>, vector<1x64x256xf32>
    %6 = vector.shape_cast %5 : vector<1x64x256xf32> to vector<64x256xf32>
    %cst_8 = arith.constant dense<0.000000e+00> : vector<64x256xf32>
    %7 = tpu.matmul %4, %6, %cst_8 {dimension_numbers = #tpu.dot_dimension_numbers<[1], [0], [0], [1], [0, 0, 1, 1], [], []>} : vector<64x64xf32>, vector<64x256xf32>, vector<64x256xf32> -> vector<64x256xf32>
    %8 = arith.addf %1, %7 : vector<64x256xf32>
    %c1 = arith.constant 1 : index
    %c0_9 = arith.constant 0 : index
    %c0_10 = arith.constant 0 : index
    %9 = vector.load %arg2[%c1, %c0_9, %c0_10] : memref<3x64x32xf32, #tpu.memory_space<vmem>>, vector<1x64x32xf32>
    %10 = vector.shape_cast %9 : vector<1x64x32xf32> to vector<64x32xf32>
    %cst_11 = arith.constant dense<0.000000e+00> : vector<64x64xf32>
    %11 = tpu.matmul %10, %0, %cst_11 {dimension_numbers = #tpu.dot_dimension_numbers<[1], [0], [0], [1], [0, 0, 1, 1], [], []>} : vector<64x32xf32>, vector<32x64xf32>, vector<64x64xf32> -> vector<64x64xf32>
    %c1_12 = arith.constant 1 : index
    %c0_13 = arith.constant 0 : index
    %c0_14 = arith.constant 0 : index
    %12 = vector.load %arg3[%c1_12, %c0_13, %c0_14] : memref<3x64x256xf32, #tpu.memory_space<vmem>>, vector<1x64x256xf32>
    %13 = vector.shape_cast %12 : vector<1x64x256xf32> to vector<64x256xf32>
    %cst_15 = arith.constant dense<0.000000e+00> : vector<64x256xf32>
    %14 = tpu.matmul %11, %13, %cst_15 {dimension_numbers = #tpu.dot_dimension_numbers<[1], [0], [0], [1], [0, 0, 1, 1], [], []>} : vector<64x64xf32>, vector<64x256xf32>, vector<64x256xf32> -> vector<64x256xf32>
    %15 = arith.addf %8, %14 : vector<64x256xf32>
    %c2 = arith.constant 2 : index
    %c0_16 = arith.constant 0 : index
    %c0_17 = arith.constant 0 : index
    %16 = vector.load %arg2[%c2, %c0_16, %c0_17] : memref<3x64x32xf32, #tpu.memory_space<vmem>>, vector<1x64x32xf32>
    %17 = vector.shape_cast %16 : vector<1x64x32xf32> to vector<64x32xf32>
    %cst_18 = arith.constant dense<0.000000e+00> : vector<64x64xf32>
    %18 = tpu.matmul %17, %0, %cst_18 {dimension_numbers = #tpu.dot_dimension_numbers<[1], [0], [0], [1], [0, 0, 1, 1], [], []>} : vector<64x32xf32>, vector<32x64xf32>, vector<64x64xf32> -> vector<64x64xf32>
    %c2_19 = arith.constant 2 : index
    %c0_20 = arith.constant 0 : index
    %c0_21 = arith.constant 0 : index
    %19 = vector.load %arg3[%c2_19, %c0_20, %c0_21] : memref<3x64x256xf32, #tpu.memory_space<vmem>>, vector<1x64x256xf32>
    %20 = vector.shape_cast %19 : vector<1x64x256xf32> to vector<64x256xf32>
    %cst_22 = arith.constant dense<0.000000e+00> : vector<64x256xf32>
    %21 = tpu.matmul %18, %20, %cst_22 {dimension_numbers = #tpu.dot_dimension_numbers<[1], [0], [0], [1], [0, 0, 1, 1], [], []>} : vector<64x64xf32>, vector<64x256xf32>, vector<64x256xf32> -> vector<64x256xf32>
    %22 = arith.addf %15, %21 : vector<64x256xf32>
    %c0_23 = arith.constant 0 : index
    %c0_24 = arith.constant 0 : index
    %23 = vector.load %arg4[%c0_23, %c0_24] : memref<64x256xf32, #tpu.memory_space<vmem>>, vector<64x256xf32>
    tpu.vector_store %arg4[%c0_23, %c0_24], %22 {strides = array<i32>} : memref<64x256xf32, #tpu.memory_space<vmem>>, vector<64x256xf32>,
    return
  }
  func.func @transform_0(%arg0: i32) -> (i32, i32) {
    %c0_i32 = arith.constant 0 : i32
    %c0_i32_0 = arith.constant 0 : i32
    return %arg0, %c0_i32 : i32, i32
  }
  func.func @transform_1(%arg0: i32) -> (i32, i32, i32) {
    %c0_i32 = arith.constant 0 : i32
    %c0_i32_0 = arith.constant 0 : i32
    %c0_i32_1 = arith.constant 0 : i32
    %c0_i32_2 = arith.constant 0 : i32
    return %c0_i32, %c0_i32_0, %c0_i32_1 : i32, i32, i32
  }
  func.func @transform_2(%arg0: i32) -> (i32, i32, i32) {
    %c0_i32 = arith.constant 0 : i32
    %c0_i32_0 = arith.constant 0 : i32
    %c0_i32_1 = arith.constant 0 : i32
    %c0_i32_2 = arith.constant 0 : i32
    return %c0_i32, %c0_i32_0, %c0_i32_1 : i32, i32, i32
  }
  func.func @transform_3(%arg0: i32) -> (i32, i32) {
    %c0_i32 = arith.constant 0 : i32
    %c0_i32_0 = arith.constant 0 : i32
    return %arg0, %c0_i32 : i32, i32
  }
}

</mosaic_0001>

<llo_original>
// kernel: tpu_custom_call.1
$region0: #{tpu_custom_call.1}
  #allocation0 [shape = 'u32[]', space=smem, size = 0x4, offset = 0x4, fixed_abs, tag = 'smem constant byte address 0x4 - core index']
  #allocation1 [shape = 'u32[72,128]{1,0:T(1,128)}', space=vmem, size = 0x9000, scoped, tag = 'internal scratch']
  %s0 = inlined_call_operand.vmem [shape: f32[32,64], index: 0, kind: input, shape index: {}]
  %s1 = inlined_call_operand.vmem [shape: f32[3,64,32], index: 1, kind: input, shape index: {}]
  %s2 = inlined_call_operand.hbm [shape: f32[3,64,256], index: 2, kind: input, shape index: {}]
  %s3 = inlined_call_operand.hbm [shape: f32[64,256], index: 3, kind: output, shape index: {}]
  %s4 = sld [smem:[#allocation0]]
  $region26: #{tpu_custom_call.1} parent=0
    _
  %s6 = ssub.s32 1, %s4
  %s7 = scalar_select 0, %s6, %s4
  $region1: #{tpu_custom_call.1} parent=0
    #allocation2 [shape = 'u8[196608]{0}', space=vmem, size = 0x30000, scoped, tag = 'input window, operand 2, single buffered']
    #allocation3 [shape = 's32[1]{0}', space=sflag, size = 0x4, scoped, tag = 'scoped memory for tpu_custom_call.1']
    #allocation4 [shape = 's32[1]{0}', space=sflag, size = 0x4, scoped, tag = 'scoped memory for tpu_custom_call.1']
    #allocation5 [shape = 'u8[65536]{0}', space=vmem, size = 0x10000, scoped, tag = 'output window, operand 0, single buffered']
    %8 = vsyncpa [#allocation3], 0
    %9 = vsyncpa [#allocation4], 0
    // Predicated region
    $region2: #{tpu_custom_call.1} parent=1 // pred_check
      _
    $region3: #{tpu_custom_call.1} parent=1 // pred_check_branch
      %11 = sbr.rel (0) target = $region5
    $region4: #{tpu_custom_call.1} parent=1 // pred_region
      _
    $region5: #{tpu_custom_call.1} parent=1 // pred_fallthru
      _
    // Predicated region
    $region6: #{tpu_custom_call.1} parent=1 // pred_check
      _
    $region7: #{tpu_custom_call.1} parent=1 // pred_check_branch
      %13 = sbr.rel (0) target = $region9
    $region8: #{tpu_custom_call.1} parent=1 // pred_region
      _
    $region9: #{tpu_custom_call.1} parent=1 // pred_fallthru
      _
    // Predicated region
    $region10: #{tpu_custom_call.1} parent=1 // pred_check
      _
    $region11: #{tpu_custom_call.1} parent=1 // pred_check_branch
      %15 = sbr.rel (0) target = $region13
    $region12: #{tpu_custom_call.1} parent=1 // pred_region
      %17 = vsyncadd [#allocation3], 0
      %s18 = sshll.u32 %s2, 4
      %s19 = int_to_ptr.hbm [resolvable:$true] %s18
      %s20 = sshll.u32 [#allocation2], 4
      %s21 = int_to_ptr.vmem [resolvable:$true] %s20
      %26 = dma.hbm_to_vmem [thread:$0]  %s19, 6144, %s21, [#allocation3], 256, 256, 16
    $region13: #{tpu_custom_call.1} parent=1 // pred_fallthru
      _
    // Predicated region
    $region14: #{tpu_custom_call.1} parent=1 // pred_check
      _
    $region15: #{tpu_custom_call.1} parent=1 // pred_check_branch
      %28 = sbr.rel (0) target = $region17
    $region16: #{tpu_custom_call.1} parent=1 // pred_region
      %30 = dma.done [#allocation3], 6144
    $region17: #{tpu_custom_call.1} parent=1 // pred_fallthru
      _
    %v31 = vld [vmem:[%s0] sm:$0xff]
    %v32 = vld [vmem:[%s0 + $0x8] sm:$0xff]
    %v33 = vld [vmem:[%s0 + $0x10] sm:$0xff]
    %v34 = vld [vmem:[%s0 + $0x18] sm:$0xff]
    %v35 = vld [vmem:[%s1] sm:$0xff]
    %v36 = vld [vmem:[%s1 + $0x8] sm:$0xff]
    %v37 = vld [vmem:[%s1 + $0x10] sm:$0xff]
    %v38 = vld [vmem:[%s1 + $0x18] sm:$0xff]
    %v39 = vld [vmem:[%s1 + $0x20] sm:$0xff]
    %v40 = vld [vmem:[%s1 + $0x28] sm:$0xff]
    %v41 = vld [vmem:[%s1 + $0x30] sm:$0xff]
    %v42 = vld [vmem:[%s1 + $0x38] sm:$0xff]
    %vm43 = vcmask 261120
    %v45 = vsel %vm43, %v35, 0
    %v48 = vsel %vm43, %v36, 0
    %v51 = vsel %vm43, %v37, 0
    %v54 = vsel %vm43, %v38, 0
    %v57 = vsel %vm43, %v39, 0
    %v60 = vsel %vm43, %v40, 0
    %v63 = vsel %vm43, %v41, 0
    %v66 = vsel %vm43, %v42, 0
    %68 = vmatpush.msra.mxu0 0.0
    %69 = vmatpush.msra.mxu0 0.0
    %70 = vmatpush.msra.mxu0 0.0
    %71 = vmatpush.msra.mxu0 0.0
    %72 = vmatpush.msra.mxu0 0.0
    %73 = vmatpush.msra.mxu0 0.0
    %74 = vmatpush.msra.mxu0 0.0
    %75 = vmatpush.msra.mxu0 0.0
    %76 = vmatpush.msra.mxu0 0.0
    %77 = vmatpush.msra.mxu0 0.0
    %78 = vmatpush.msra.mxu0 0.0
    %79 = vmatpush.msra.mxu0 0.0
    %80 = vmatpush.msra.mxu0 %v34
    %81 = vmatpush.msra.mxu0 %v33
    %82 = vmatpush.msra.mxu0 %v32
    %83 = vmatpush.msra.mxu0 %v31
    %84 = vmatmul.f32.gmra.mxu0 %v45
    %v85 = vpop.f32.mrf.mxu0
    %v86 = vadd.f32 0.0, %v85
    %87 = vmatmul.f32.gmra.mxu0 %v48
    %v88 = vpop.f32.mrf.mxu0
    %v89 = vadd.f32 0.0, %v88
    %90 = vmatmul.f32.gmra.mxu0 %v51
    %v91 = vpop.f32.mrf.mxu0
    %v92 = vadd.f32 0.0, %v91
    %93 = vmatmul.f32.gmra.mxu0 %v54
    %v94 = vpop.f32.mrf.mxu0
    %v95 = vadd.f32 0.0, %v94
    %96 = vmatmul.f32.gmra.mxu0 %v57
    %v97 = vpop.f32.mrf.mxu0
    %v98 = vadd.f32 0.0, %v97
    %99 = vmatmul.f32.gmra.mxu0 %v60
    %v100 = vpop.f32.mrf.mxu0
    %v101 = vadd.f32 0.0, %v100
    %102 = vmatmul.f32.gmra.mxu0 %v63
    %v103 = vpop.f32.mrf.mxu0
    %v104 = vadd.f32 0.0, %v103
    %105 = vmatmul.f32.gmra.mxu0 %v66
    %v106 = vpop.f32.mrf.mxu0
    %v107 = vadd.f32 0.0, %v106
    %108 = vdwg.mxu0
    %v109 = vld [vmem:[#allocation2] sm:$0xff]
    %v110 = vld [vmem:[#allocation2 + $0x8] sm:$0xff]
    %v111 = vld [vmem:[#allocation2 + $0x10] sm:$0xff]
    %v112 = vld [vmem:[#allocation2 + $0x18] sm:$0xff]
    %v113 = vld [vmem:[#allocation2 + $0x20] sm:$0xff]
    %v114 = vld [vmem:[#allocation2 + $0x28] sm:$0xff]
    %v115 = vld [vmem:[#allocation2 + $0x30] sm:$0xff]
    %v116 = vld [vmem:[#allocation2 + $0x38] sm:$0xff]
    %v117 = vld [vmem:[#allocation2 + $0x40] sm:$0xff]
    %v118 = vld [vmem:[#allocation2 + $0x48] sm:$0xff]
    %v119 = vld [vmem:[#allocation2 + $0x50] sm:$0xff]
    %v120 = vld [vmem:[#allocation2 + $0x58] sm:$0xff]
    %v121 = vld [vmem:[#allocation2 + $0x60] sm:$0xff]
    %v122 = vld [vmem:[#allocation2 + $0x68] sm:$0xff]
    %v123 = vld [vmem:[#allocation2 + $0x70] sm:$0xff]
    %v124 = vld [vmem:[#allocation2 + $0x78] sm:$0xff]
    %s125 = scalar_lea.vmem %s1, 64
    %v126 = vld [vmem:[%s125] sm:$0xff]
    %v127 = vld [vmem:[%s125 + $0x8] sm:$0xff]
    %v128 = vld [vmem:[%s125 + $0x10] sm:$0xff]
    %v129 = vld [vmem:[%s125 + $0x18] sm:$0xff]
    %v130 = vld [vmem:[%s125 + $0x20] sm:$0xff]
    %v131 = vld [vmem:[%s125 + $0x28] sm:$0xff]
    %v132 = vld [vmem:[%s125 + $0x30] sm:$0xff]
    %v133 = vld [vmem:[%s125 + $0x38] sm:$0xff]
    %v135 = vsel %vm43, %v126, 0
    %v138 = vsel %vm43, %v127, 0
    %v141 = vsel %vm43, %v128, 0
    %v144 = vsel %vm43, %v129, 0
    %v147 = vsel %vm43, %v130, 0
    %v150 = vsel %vm43, %v131, 0
    %v153 = vsel %vm43, %v132, 0
    %v156 = vsel %vm43, %v133, 0
    %158 = vmatpush.msra.mxu0 0.0
    %159 = vmatpush.msra.mxu0 0.0
    %160 = vmatpush.msra.mxu0 0.0
    %161 = vmatpush.msra.mxu0 0.0
    %162 = vmatpush.msra.mxu0 0.0
    %163 = vmatpush.msra.mxu0 0.0
    %164 = vmatpush.msra.mxu0 0.0
    %165 = vmatpush.msra.mxu0 0.0
    %166 = vmatpush.msra.mxu0 0.0
    %167 = vmatpush.msra.mxu0 0.0
    %168 = vmatpush.msra.mxu0 0.0
    %169 = vmatpush.msra.mxu0 0.0
    %170 = vmatpush.msra.mxu0 %v34
    %171 = vmatpush.msra.mxu0 %v33
    %172 = vmatpush.msra.mxu0 %v32
    %173 = vmatpush.msra.mxu0 %v31
    %174 = vmatmul.f32.gmra.mxu0 %v135
    %v175 = vpop.f32.mrf.mxu0
    %v176 = vadd.f32 0.0, %v175
    %177 = vmatmul.f32.gmra.mxu0 %v138
    %v178 = vpop.f32.mrf.mxu0
    %v179 = vadd.f32 0.0, %v178
    %180 = vmatmul.f32.gmra.mxu0 %v141
    %v181 = vpop.f32.mrf.mxu0
    %v182 = vadd.f32 0.0, %v181
    %183 = vmatmul.f32.gmra.mxu0 %v144
    %v184 = vpop.f32.mrf.mxu0
    %v185 = vadd.f32 0.0, %v184
    %186 = vmatmul.f32.gmra.mxu0 %v147
    %v187 = vpop.f32.mrf.mxu0
    %v188 = vadd.f32 0.0, %v187
    %189 = vmatmul.f32.gmra.mxu0 %v150
    %v190 = vpop.f32.mrf.mxu0
    %v191 = vadd.f32 0.0, %v190
    %192 = vmatmul.f32.gmra.mxu0 %v153
    %v193 = vpop.f32.mrf.mxu0
    %v194 = vadd.f32 0.0, %v193
    %195 = vmatmul.f32.gmra.mxu0 %v156
    %v196 = vpop.f32.mrf.mxu0
    %v197 = vadd.f32 0.0, %v196
    %198 = vdwg.mxu0
    %s199 = scalar_lea.vmem [#allocation2], 128
    %v200 = vld [vmem:[%s199] sm:$0xff]
    %v201 = vld [vmem:[%s199 + $0x8] sm:$0xff]
    %v202 = vld [vmem:[%s199 + $0x10] sm:$0xff]
    %v203 = vld [vmem:[%s199 + $0x18] sm:$0xff]
    %v204 = vld [vmem:[%s199 + $0x20] sm:$0xff]
    %v205 = vld [vmem:[%s199 + $0x28] sm:$0xff]
    %v206 = vld [vmem:[%s199 + $0x30] sm:$0xff]
    %v207 = vld [vmem:[%s199 + $0x38] sm:$0xff]
    %v208 = vld [vmem:[%s199 + $0x40] sm:$0xff]
    %v209 = vld [vmem:[%s199 + $0x48] sm:$0xff]
    %v210 = vld [vmem:[%s199 + $0x50] sm:$0xff]
    %v211 = vld [vmem:[%s199 + $0x58] sm:$0xff]
    %v212 = vld [vmem:[%s199 + $0x60] sm:$0xff]
    %v213 = vld [vmem:[%s199 + $0x68] sm:$0xff]
    %v214 = vld [vmem:[%s199 + $0x70] sm:$0xff]
    %v215 = vld [vmem:[%s199 + $0x78] sm:$0xff]
    %vm216 = vcmask 523264
    %v218 = vsel %vm216, %v176, 0
    %v221 = vsel %vm216, %v179, 0
    %v224 = vsel %vm216, %v182, 0
    %v227 = vsel %vm216, %v185, 0
    %v230 = vsel %vm216, %v188, 0
    %v233 = vsel %vm216, %v191, 0
    %v236 = vsel %vm216, %v194, 0
    %v239 = vsel %vm216, %v197, 0
    %241 = vmatpush.msra.mxu0 0.0
    %242 = vmatpush.msra.mxu0 0.0
    %243 = vmatpush.msra.mxu0 0.0
    %244 = vmatpush.msra.mxu0 0.0
    %245 = vmatpush.msra.mxu0 0.0
    %246 = vmatpush.msra.mxu0 0.0
    %247 = vmatpush.msra.mxu0 0.0
    %248 = vmatpush.msra.mxu0 0.0
    %249 = vmatpush.msra.mxu0 %v214
    %250 = vmatpush.msra.mxu0 %v212
    %251 = vmatpush.msra.mxu0 %v210
    %252 = vmatpush.msra.mxu0 %v208
    %253 = vmatpush.msra.mxu0 %v206
    %254 = vmatpush.msra.mxu0 %v204
    %255 = vmatpush.msra.mxu0 %v202
    %256 = vmatpush.msra.mxu0 %v200
    %257 = vmatmul.f32.gmra.mxu0 %v218
    %v258 = vpop.f32.mrf.mxu0
    %v259 = vadd.f32 0.0, %v258
    %260 = vmatmul.f32.gmra.mxu0 %v221
    %v261 = vpop.f32.mrf.mxu0
    %v262 = vadd.f32 0.0, %v261
    %263 = vmatmul.f32.gmra.mxu0 %v224
    %v264 = vpop.f32.mrf.mxu0
    %v265 = vadd.f32 0.0, %v264
    %266 = vmatmul.f32.gmra.mxu0 %v227
    %v267 = vpop.f32.mrf.mxu0
    %v268 = vadd.f32 0.0, %v267
    %269 = vmatmul.f32.gmra.mxu0 %v230
    %v270 = vpop.f32.mrf.mxu0
    %v271 = vadd.f32 0.0, %v270
    %272 = vmatmul.f32.gmra.mxu0 %v233
    %v273 = vpop.f32.mrf.mxu0
    %v274 = vadd.f32 0.0, %v273
    %275 = vmatmul.f32.gmra.mxu0 %v236
    %v276 = vpop.f32.mrf.mxu0
    %v277 = vadd.f32 0.0, %v276
    %278 = vmatmul.f32.gmra.mxu0 %v239
    %v279 = vpop.f32.mrf.mxu0
    %v280 = vadd.f32 0.0, %v279
    %281 = vdwg.mxu0
    %282 = vmatpush.msra.mxu0 0.0
    %283 = vmatpush.msra.mxu0 0.0
    %284 = vmatpush.msra.mxu0 0.0
    %285 = vmatpush.msra.mxu0 0.0
    %286 = vmatpush.msra.mxu0 0.0
    %287 = vmatpush.msra.mxu0 0.0
    %288 = vmatpush.msra.mxu0 0.0
    %289 = vmatpush.msra.mxu0 0.0
    %290 = vmatpush.msra.mxu0 %v215
    %291 = vmatpush.msra.mxu0 %v213
    %292 = vmatpush.msra.mxu0 %v211
    %293 = vmatpush.msra.mxu0 %v209
    %294 = vmatpush.msra.mxu0 %v207
    %295 = vmatpush.msra.mxu0 %v205
    %296 = vmatpush.msra.mxu0 %v203
    %297 = vmatpush.msra.mxu0 %v201
    %298 = vmatmul.f32.gmra.mxu0 %v218
    %v299 = vpop.f32.mrf.mxu0
    %v300 = vadd.f32 0.0, %v299
    %301 = vmatmul.f32.gmra.mxu0 %v221
    %v302 = vpop.f32.mrf.mxu0
    %v303 = vadd.f32 0.0, %v302
    %304 = vmatmul.f32.gmra.mxu0 %v224
    %v305 = vpop.f32.mrf.mxu0
    %v306 = vadd.f32 0.0, %v305
    %307 = vmatmul.f32.gmra.mxu0 %v227
    %v308 = vpop.f32.mrf.mxu0
    %v309 = vadd.f32 0.0, %v308
    %310 = vmatmul.f32.gmra.mxu0 %v230
    %v311 = vpop.f32.mrf.mxu0
    %v312 = vadd.f32 0.0, %v311
    %313 = vmatmul.f32.gmra.mxu0 %v233
    %v314 = vpop.f32.mrf.mxu0
    %v315 = vadd.f32 0.0, %v314
    %316 = vmatmul.f32.gmra.mxu0 %v236
    %v317 = vpop.f32.mrf.mxu0
    %v318 = vadd.f32 0.0, %v317
    %319 = vmatmul.f32.gmra.mxu0 %v239
    %v320 = vpop.f32.mrf.mxu0
    %v321 = vadd.f32 0.0, %v320
    %322 = vdwg.mxu0
    %v324 = vsel %vm216, %v86, 0
    %v327 = vsel %vm216, %v89, 0
    %v330 = vsel %vm216, %v92, 0
    %v333 = vsel %vm216, %v95, 0
    %v336 = vsel %vm216, %v98, 0
    %v339 = vsel %vm216, %v101, 0
    %v342 = vsel %vm216, %v104, 0
    %v345 = vsel %vm216, %v107, 0
    %347 = vmatpush.msra.mxu0 0.0
    %348 = vmatpush.msra.mxu0 0.0
    %349 = vmatpush.msra.mxu0 0.0
    %350 = vmatpush.msra.mxu0 0.0
    %351 = vmatpush.msra.mxu0 0.0
    %352 = vmatpush.msra.mxu0 0.0
    %353 = vmatpush.msra.mxu0 0.0
    %354 = vmatpush.msra.mxu0 0.0
    %355 = vmatpush.msra.mxu0 %v123
    %356 = vmatpush.msra.mxu0 %v121
    %357 = vmatpush.msra.mxu0 %v119
    %358 = vmatpush.msra.mxu0 %v117
    %359 = vmatpush.msra.mxu0 %v115
    %360 = vmatpush.msra.mxu0 %v113
    %361 = vmatpush.msra.mxu0 %v111
    %362 = vmatpush.msra.mxu0 %v109
    %363 = vmatmul.f32.gmra.mxu0 %v324
    %v364 = vpop.f32.mrf.mxu0
    %v365 = vadd.f32 %v259, %v364
    %366 = vmatmul.f32.gmra.mxu0 %v327
    %v367 = vpop.f32.mrf.mxu0
    %v368 = vadd.f32 %v262, %v367
    %369 = vmatmul.f32.gmra.mxu0 %v330
    %v370 = vpop.f32.mrf.mxu0
    %v371 = vadd.f32 %v265, %v370
    %372 = vmatmul.f32.gmra.mxu0 %v333
    %v373 = vpop.f32.mrf.mxu0
    %v374 = vadd.f32 %v268, %v373
    %375 = vmatmul.f32.gmra.mxu0 %v336
    %v376 = vpop.f32.mrf.mxu0
    %v377 = vadd.f32 %v271, %v376
    %378 = vmatmul.f32.gmra.mxu0 %v339
    %v379 = vpop.f32.mrf.mxu0
    %v380 = vadd.f32 %v274, %v379
    %381 = vmatmul.f32.gmra.mxu0 %v342
    %v382 = vpop.f32.mrf.mxu0
    %v383 = vadd.f32 %v277, %v382
    %384 = vmatmul.f32.gmra.mxu0 %v345
    %v385 = vpop.f32.mrf.mxu0
    %v386 = vadd.f32 %v280, %v385
    %387 = vdwg.mxu0
    %388 = vmatpush.msra.mxu0 0.0
    %389 = vmatpush.msra.mxu0 0.0
    %390 = vmatpush.msra.mxu0 0.0
    %391 = vmatpush.msra.mxu0 0.0
    %392 = vmatpush.msra.mxu0 0.0
    %393 = vmatpush.msra.mxu0 0.0
    %394 = vmatpush.msra.mxu0 0.0
    %395 = vmatpush.msra.mxu0 0.0
    %396 = vmatpush.msra.mxu0 %v124
    %397 = vmatpush.msra.mxu0 %v122
    %398 = vmatpush.msra.mxu0 %v120
    %399 = vmatpush.msra.mxu0 %v118
    %400 = vmatpush.msra.mxu0 %v116
    %401 = vmatpush.msra.mxu0 %v114
    %402 = vmatpush.msra.mxu0 %v112
    %403 = vmatpush.msra.mxu0 %v110
    %404 = vmatmul.f32.gmra.mxu0 %v324
    %v405 = vpop.f32.mrf.mxu0
    %v406 = vadd.f32 %v300, %v405
    %407 = vmatmul.f32.gmra.mxu0 %v327
    %v408 = vpop.f32.mrf.mxu0
    %v409 = vadd.f32 %v303, %v408
    %410 = vmatmul.f32.gmra.mxu0 %v330
    %v411 = vpop.f32.mrf.mxu0
    %v412 = vadd.f32 %v306, %v411
    %413 = vmatmul.f32.gmra.mxu0 %v333
    %v414 = vpop.f32.mrf.mxu0
    %v415 = vadd.f32 %v309, %v414
    %416 = vmatmul.f32.gmra.mxu0 %v336
    %v417 = vpop.f32.mrf.mxu0
    %v418 = vadd.f32 %v312, %v417
    %419 = vmatmul.f32.gmra.mxu0 %v339
    %v420 = vpop.f32.mrf.mxu0
    %v421 = vadd.f32 %v315, %v420
    %422 = vmatmul.f32.gmra.mxu0 %v342
    %v423 = vpop.f32.mrf.mxu0
    %v424 = vadd.f32 %v318, %v423
    %425 = vmatmul.f32.gmra.mxu0 %v345
    %v426 = vpop.f32.mrf.mxu0
    %v427 = vadd.f32 %v321, %v426
    %428 = vdwg.mxu0
    %s429 = scalar_lea.vmem %s1, 128
    %v430 = vld [vmem:[%s429] sm:$0xff]
    %v431 = vld [vmem:[%s429 + $0x8] sm:$0xff]
    %v432 = vld [vmem:[%s429 + $0x10] sm:$0xff]
    %v433 = vld [vmem:[%s429 + $0x18] sm:$0xff]
    %v434 = vld [vmem:[%s429 + $0x20] sm:$0xff]
    %v435 = vld [vmem:[%s429 + $0x28] sm:$0xff]
    %v436 = vld [vmem:[%s429 + $0x30] sm:$0xff]
    %v437 = vld [vmem:[%s429 + $0x38] sm:$0xff]
    %v439 = vsel %vm43, %v430, 0
    %v442 = vsel %vm43, %v431, 0
    %v445 = vsel %vm43, %v432, 0
    %v448 = vsel %vm43, %v433, 0
    %v451 = vsel %vm43, %v434, 0
    %v454 = vsel %vm43, %v435, 0
    %v457 = vsel %vm43, %v436, 0
    %v460 = vsel %vm43, %v437, 0
    %462 = vmatpush.msra.mxu0 0.0
    %463 = vmatpush.msra.mxu0 0.0
    %464 = vmatpush.msra.mxu0 0.0
    %465 = vmatpush.msra.mxu0 0.0
    %466 = vmatpush.msra.mxu0 0.0
    %467 = vmatpush.msra.mxu0 0.0
    %468 = vmatpush.msra.mxu0 0.0
    %469 = vmatpush.msra.mxu0 0.0
    %470 = vmatpush.msra.mxu0 0.0
    %471 = vmatpush.msra.mxu0 0.0
    %472 = vmatpush.msra.mxu0 0.0
    %473 = vmatpush.msra.mxu0 0.0
    %474 = vmatpush.msra.mxu0 %v34
    %475 = vmatpush.msra.mxu0 %v33
    %476 = vmatpush.msra.mxu0 %v32
    %477 = vmatpush.msra.mxu0 %v31
    %478 = vmatmul.f32.gmra.mxu0 %v439
    %v479 = vpop.f32.mrf.mxu0
    %v480 = vadd.f32 0.0, %v479
    %481 = vmatmul.f32.gmra.mxu0 %v442
    %v482 = vpop.f32.mrf.mxu0
    %v483 = vadd.f32 0.0, %v482
    %484 = vmatmul.f32.gmra.mxu0 %v445
    %v485 = vpop.f32.mrf.mxu0
    %v486 = vadd.f32 0.0, %v485
    %487 = vmatmul.f32.gmra.mxu0 %v448
    %v488 = vpop.f32.mrf.mxu0
    %v489 = vadd.f32 0.0, %v488
    %490 = vmatmul.f32.gmra.mxu0 %v451
    %v491 = vpop.f32.mrf.mxu0
    %v492 = vadd.f32 0.0, %v491
    %493 = vmatmul.f32.gmra.mxu0 %v454
    %v494 = vpop.f32.mrf.mxu0
    %v495 = vadd.f32 0.0, %v494
    %496 = vmatmul.f32.gmra.mxu0 %v457
    %v497 = vpop.f32.mrf.mxu0
    %v498 = vadd.f32 0.0, %v497
    %499 = vmatmul.f32.gmra.mxu0 %v460
    %v500 = vpop.f32.mrf.mxu0
    %v501 = vadd.f32 0.0, %v500
    %502 = vdwg.mxu0
    %s503 = scalar_lea.vmem [#allocation2], 256
    %v504 = vld [vmem:[%s503] sm:$0xff]
    %v505 = vld [vmem:[%s503 + $0x8] sm:$0xff]
    %v506 = vld [vmem:[%s503 + $0x10] sm:$0xff]
    %v507 = vld [vmem:[%s503 + $0x18] sm:$0xff]
    %v508 = vld [vmem:[%s503 + $0x20] sm:$0xff]
    %v509 = vld [vmem:[%s503 + $0x28] sm:$0xff]
    %v510 = vld [vmem:[%s503 + $0x30] sm:$0xff]
    %v511 = vld [vmem:[%s503 + $0x38] sm:$0xff]
    %v512 = vld [vmem:[%s503 + $0x40] sm:$0xff]
    %v513 = vld [vmem:[%s503 + $0x48] sm:$0xff]
    %v514 = vld [vmem:[%s503 + $0x50] sm:$0xff]
    %v515 = vld [vmem:[%s503 + $0x58] sm:$0xff]
    %v516 = vld [vmem:[%s503 + $0x60] sm:$0xff]
    %v517 = vld [vmem:[%s503 + $0x68] sm:$0xff]
    %v518 = vld [vmem:[%s503 + $0x70] sm:$0xff]
    %v519 = vld [vmem:[%s503 + $0x78] sm:$0xff]
    %v521 = vsel %vm216, %v480, 0
    %v524 = vsel %vm216, %v483, 0
    %v527 = vsel %vm216, %v486, 0
    %v530 = vsel %vm216, %v489, 0
    %v533 = vsel %vm216, %v492, 0
    %v536 = vsel %vm216, %v495, 0
    %v539 = vsel %vm216, %v498, 0
    %v542 = vsel %vm216, %v501, 0
    %544 = vmatpush.msra.mxu0 0.0
    %545 = vmatpush.msra.mxu0 0.0
    %546 = vmatpush.msra.mxu0 0.0
    %547 = vmatpush.msra.mxu0 0.0
    %548 = vmatpush.msra.mxu0 0.0
    %549 = vmatpush.msra.mxu0 0.0
    %550 = vmatpush.msra.mxu0 0.0
    %551 = vmatpush.msra.mxu0 0.0
    %552 = vmatpush.msra.mxu0 %v518
    %553 = vmatpush.msra.mxu0 %v516
    %554 = vmatpush.msra.mxu0 %v514
    %555 = vmatpush.msra.mxu0 %v512
    %556 = vmatpush.msra.mxu0 %v510
    %557 = vmatpush.msra.mxu0 %v508
    %558 = vmatpush.msra.mxu0 %v506
    %559 = vmatpush.msra.mxu0 %v504
    %560 = vmatmul.f32.gmra.mxu0 %v521
    %v561 = vpop.f32.mrf.mxu0
    %v562 = vadd.f32 0.0, %v561
    %563 = vmatmul.f32.gmra.mxu0 %v524
    %v564 = vpop.f32.mrf.mxu0
    %v565 = vadd.f32 0.0, %v564
    %566 = vmatmul.f32.gmra.mxu0 %v527
    %v567 = vpop.f32.mrf.mxu0
    %v568 = vadd.f32 0.0, %v567
    %569 = vmatmul.f32.gmra.mxu0 %v530
    %v570 = vpop.f32.mrf.mxu0
    %v571 = vadd.f32 0.0, %v570
    %572 = vmatmul.f32.gmra.mxu0 %v533
    %v573 = vpop.f32.mrf.mxu0
    %v574 = vadd.f32 0.0, %v573
    %575 = vmatmul.f32.gmra.mxu0 %v536
    %v576 = vpop.f32.mrf.mxu0
    %v577 = vadd.f32 0.0, %v576
    %578 = vmatmul.f32.gmra.mxu0 %v539
    %v579 = vpop.f32.mrf.mxu0
    %v580 = vadd.f32 0.0, %v579
    %581 = vmatmul.f32.gmra.mxu0 %v542
    %v582 = vpop.f32.mrf.mxu0
    %v583 = vadd.f32 0.0, %v582
    %584 = vdwg.mxu0
    %585 = vmatpush.msra.mxu0 0.0
    %586 = vmatpush.msra.mxu0 0.0
    %587 = vmatpush.msra.mxu0 0.0
    %588 = vmatpush.msra.mxu0 0.0
    %589 = vmatpush.msra.mxu0 0.0
    %590 = vmatpush.msra.mxu0 0.0
    %591 = vmatpush.msra.mxu0 0.0
    %592 = vmatpush.msra.mxu0 0.0
    %593 = vmatpush.msra.mxu0 %v519
    %594 = vmatpush.msra.mxu0 %v517
    %595 = vmatpush.msra.mxu0 %v515
    %596 = vmatpush.msra.mxu0 %v513
    %597 = vmatpush.msra.mxu0 %v511
    %598 = vmatpush.msra.mxu0 %v509
    %599 = vmatpush.msra.mxu0 %v507
    %600 = vmatpush.msra.mxu0 %v505
    %601 = vmatmul.f32.gmra.mxu0 %v521
    %v602 = vpop.f32.mrf.mxu0
    %v603 = vadd.f32 0.0, %v602
    %604 = vmatmul.f32.gmra.mxu0 %v524
    %v605 = vpop.f32.mrf.mxu0
    %v606 = vadd.f32 0.0, %v605
    %607 = vmatmul.f32.gmra.mxu0 %v527
    %v608 = vpop.f32.mrf.mxu0
    %v609 = vadd.f32 0.0, %v608
    %610 = vmatmul.f32.gmra.mxu0 %v530
    %v611 = vpop.f32.mrf.mxu0
    %v612 = vadd.f32 0.0, %v611
    %613 = vmatmul.f32.gmra.mxu0 %v533
    %v614 = vpop.f32.mrf.mxu0
    %v615 = vadd.f32 0.0, %v614
    %616 = vmatmul.f32.gmra.mxu0 %v536
    %v617 = vpop.f32.mrf.mxu0
    %v618 = vadd.f32 0.0, %v617
    %619 = vmatmul.f32.gmra.mxu0 %v539
    %v620 = vpop.f32.mrf.mxu0
    %v621 = vadd.f32 0.0, %v620
    %622 = vmatmul.f32.gmra.mxu0 %v542
    %v623 = vpop.f32.mrf.mxu0
    %v624 = vadd.f32 0.0, %v623
    %625 = vdwg.mxu0
    %v626 = vadd.f32 %v365, %v562
    %v627 = vadd.f32 %v406, %v603
    %v628 = vadd.f32 %v368, %v565
    %v629 = vadd.f32 %v409, %v606
    %v630 = vadd.f32 %v371, %v568
    %v631 = vadd.f32 %v412, %v609
    %v632 = vadd.f32 %v374, %v571
    %v633 = vadd.f32 %v415, %v612
    %v634 = vadd.f32 %v377, %v574
    %v635 = vadd.f32 %v418, %v615
    %v636 = vadd.f32 %v380, %v577
    %v637 = vadd.f32 %v421, %v618
    %v638 = vadd.f32 %v383, %v580
    %v639 = vadd.f32 %v424, %v621
    %v640 = vadd.f32 %v386, %v583
    %v641 = vadd.f32 %v427, %v624
    %642 = vst [vmem:[#allocation5] sm:$0xff] %v626
    %643 = vst [vmem:[#allocation5 + $0x8] sm:$0xff] %v627
    %644 = vst [vmem:[#allocation5 + $0x10] sm:$0xff] %v628
    %645 = vst [vmem:[#allocation5 + $0x18] sm:$0xff] %v629
    %646 = vst [vmem:[#allocation5 + $0x20] sm:$0xff] %v630
    %647 = vst [vmem:[#allocation5 + $0x28] sm:$0xff] %v631
    %648 = vst [vmem:[#allocation5 + $0x30] sm:$0xff] %v632
    %649 = vst [vmem:[#allocation5 + $0x38] sm:$0xff] %v633
    %650 = vst [vmem:[#allocation5 + $0x40] sm:$0xff] %v634
    %651 = vst [vmem:[#allocation5 + $0x48] sm:$0xff] %v635
    %652 = vst [vmem:[#allocation5 + $0x50] sm:$0xff] %v636
    %653 = vst [vmem:[#allocation5 + $0x58] sm:$0xff] %v637
    %654 = vst [vmem:[#allocation5 + $0x60] sm:$0xff] %v638
    %655 = vst [vmem:[#allocation5 + $0x68] sm:$0xff] %v639
    %656 = vst [vmem:[#allocation5 + $0x70] sm:$0xff] %v640
    %657 = vst [vmem:[#allocation5 + $0x78] sm:$0xff] %v641
    // Predicated region
    $region18: #{tpu_custom_call.1} parent=1 // pred_check
      _
    $region19: #{tpu_custom_call.1} parent=1 // pred_check_branch
      %659 = sbr.rel (0) target = $region21
    $region20: #{tpu_custom_call.1} parent=1 // pred_region
      %661 = vsyncadd [#allocation4], 0
      %s662 = sshll.u32 [#allocation5], 4
      %s663 = int_to_ptr.vmem [resolvable:$true] %s662
      %s664 = sshll.u32 %s3, 4
      %s665 = int_to_ptr.hbm [resolvable:$true] %s664
      %670 = dma.vmem_to_hbm [thread:$0]  %s663, 2048, %s665, [#allocation4], 256, 256, 16
    $region21: #{tpu_custom_call.1} parent=1 // pred_fallthru
      _
    // Predicated region
    $region22: #{tpu_custom_call.1} parent=1 // pred_check
      _
    $region23: #{tpu_custom_call.1} parent=1 // pred_check_branch
      %672 = sbr.rel (0) target = $region25
    $region24: #{tpu_custom_call.1} parent=1 // pred_region
      %674 = dma.done [#allocation4], 2048
    $region25: #{tpu_custom_call.1} parent=1 // pred_fallthru
      _
    %675 = vsyncpa [#allocation3], 1
    %676 = vsyncpa [#allocation4], 1

</llo_original>
